<compile_context>
chip_gen: v7x
topology: tpu7x:2x2x1
jax: 0.10.0
libtpu: 0.0.40
codegen_flags: <defaults>
</compile_context>

<pallas_src>
import numpy as np
import jax
import jax.numpy as jnp
from jax import lax
from jax.experimental import pallas as pl
from jax.experimental.pallas import tpu as pltpu

Q_FG = 0.996
Q_BG = 0.999


def expand_loss_kernel(sorted_ref, w_ref, lab_ref, out_ref):
    """One grid step == one batch item.

    sorted_ref : (1, C, P) f32  descending-sorted class probability maps
    w_ref      : (2, P)    f32  row 0 = w_bg_norm, row 1 = w_fg_norm
    lab_ref    : (1, C, 1) f32  multi-hot image-level labels
    out_ref    : (1, 1, 1) f32  per-batch partial loss
    """
    s = sorted_ref[0]                       # (C, P)
    w_bg = w_ref[0:1, :]                    # (1, P)
    w_fg = w_ref[1:2, :]                    # (1, P)

    # Global weighted rank pooling per class (VPU mul + XLU lane reduction).
    g_bg = jnp.sum(s * w_bg, axis=-1, keepdims=True)    # (C, 1)
    g_fg = jnp.sum(s * w_fg, axis=-1, keepdims=True)    # (C, 1)
    mx = jnp.max(s, axis=-1, keepdims=True)             # (C, 1)

    lab = lab_ref[0]                                     # (C, 1)
    exist = lab > 0.5
    cls = lax.broadcasted_iota(jnp.int32, lab.shape, 0)  # (C, 1) class index
    is_bg = cls == 0
    bg_mask = jnp.logical_and(exist, is_bg)
    fg_mask = jnp.logical_and(exist, jnp.logical_not(is_bg))
    ne_mask = jnp.logical_not(exist)

    f32 = jnp.float32
    # NOTE: matches the reference precondition that every batch item has at
    # least one existing foreground class and one non-existing class
    # (otherwise the PyTorch module divides by zero too).
    n_fg = jnp.sum(fg_mask.astype(f32), axis=0, keepdims=True)   # (1, 1)
    n_ne = jnp.sum(ne_mask.astype(f32), axis=0, keepdims=True)   # (1, 1)

    t_bg = jnp.sum(jnp.where(bg_mask, -jnp.log(g_bg), 0.0),
                   axis=0, keepdims=True)                        # (1, 1)
    t_fg = jnp.sum(jnp.where(fg_mask, -jnp.log(g_fg), 0.0),
                   axis=0, keepdims=True)
    t_ne = jnp.sum(jnp.where(ne_mask, -jnp.log(mx), 0.0),
                   axis=0, keepdims=True)

    out_ref[0] = t_bg + t_fg / n_fg + t_ne / n_ne


def expand_loss(sm_mask, labels, q_fg=Q_FG, q_bg=Q_BG):
    """Pallas implementation of ExpandLossLayer.forward. Returns a scalar f32."""
    B, C, H, W = sm_mask.shape
    P = H * W

    # GWRP decay weights (same construction as the module's __init__:
    # float64 geometric series, normalized, cast to float32).
    idx = np.arange(P, dtype=np.float64)
    w_bg = q_bg ** idx
    w_bg = (w_bg / w_bg.sum()).astype(np.float32)
    w_fg = q_fg ** idx
    w_fg = (w_fg / w_fg.sum()).astype(np.float32)
    weights = jnp.asarray(np.stack([w_bg, w_fg], axis=0))          # (2, P)

    # TODO(synk): the per-class descending sort (rank ordering for GWRP) has no
    # clean Pallas/Mosaic equivalent; it is done with XLA's sort here and the
    # kernel consumes the pre-sorted maps.
    sm_sorted = -jnp.sort(-sm_mask.reshape(B, C, P).astype(jnp.float32),
                          axis=-1)                                  # (B, C, P)
    lab = labels.reshape(B, C, 1).astype(jnp.float32)

    partial = pl.pallas_call(
        expand_loss_kernel,
        out_shape=jax.ShapeDtypeStruct((B, 1, 1), jnp.float32),
        grid_spec=pltpu.PrefetchScalarGridSpec(
            num_scalar_prefetch=0,
            grid=(B,),
            in_specs=[
                pl.BlockSpec((1, C, P), lambda b: (b, 0, 0)),   # sorted maps
                pl.BlockSpec((2, P), lambda b: (0, 0)),         # GWRP weights
                pl.BlockSpec((1, C, 1), lambda b: (b, 0, 0)),   # labels
            ],
            out_specs=pl.BlockSpec((1, 1, 1), lambda b: (b, 0, 0)),
        ),
        compiler_params=pltpu.CompilerParams(
            dimension_semantics=("parallel",)),
    )(sm_sorted, weights, lab)

    return jnp.sum(partial) / B


def expand_loss_ref(sm_mask, labels, q_fg=Q_FG, q_bg=Q_BG):
    """Direct numpy port of the PyTorch reference loops (float64 ground truth)."""
    sm = np.asarray(sm_mask, dtype=np.float64)
    lab = np.asarray(labels)
    B, C, H, W = sm.shape
    P = H * W
    idx = np.arange(P, dtype=np.float64)
    w_fg = q_fg ** idx
    w_fg = w_fg / w_fg.sum()
    w_bg = q_bg ** idx
    w_bg = w_bg / w_bg.sum()
    loss = 0.0
    for b in range(B):
        loss_temp = 0.0
        for c in np.flatnonzero(lab[b]):
            srt = np.sort(sm[b, c].reshape(P))[::-1]
            if c == 0:
                loss -= np.log((srt * w_bg).sum())
            else:
                loss_temp -= np.log((srt * w_fg).sum())
        loss += loss_temp / len(np.flatnonzero(lab[b, 1:]))
        loss_temp = 0.0
        for c in np.flatnonzero(lab[b] == 0):
            loss_temp -= np.log(sm[b, c].max())
        loss += loss_temp / len(np.flatnonzero(lab[b] == 0))
    return loss / B


if __name__ == "__main__":
    key = jax.random.PRNGKey(0)

    # The module hardcodes total_pixel_num = 41 * 41, so the spatial size is
    # fixed at 41x41; small batch / class count otherwise.
    B, C, H, W = 2, 4, 41, 41
    logits = jax.random.normal(key, (B, C, H, W), dtype=jnp.float32)
    sm_mask = jax.nn.softmax(logits, axis=1)        # channel softmax -> probs

    # Multi-hot image-level labels: class 0 = background. Every batch item has
    # >= 1 existing fg class and >= 1 non-existing class (reference
    # precondition, avoids division by zero).
    labels = jnp.array([[1.0, 1.0, 0.0, 1.0],
                        [1.0, 0.0, 1.0, 0.0]], dtype=jnp.float32)

    loss = jax.block_until_ready(jax.jit(expand_loss)(sm_mask, labels))
    ref = expand_loss_ref(sm_mask, labels)

    assert np.allclose(float(loss), ref, rtol=1e-4, atol=1e-5), (float(loss), ref)
    print("KERNEL_OK")
</pallas_src>

<mosaic_0001>
module attributes {stable_mosaic.version = 11 : i64} {
  func.func @expand_loss_kernel(%arg0: i32, %arg1: memref<1x4x1681xf32, #tpu.memory_space<vmem>>, %arg2: memref<2x1681xf32, #tpu.memory_space<vmem>>, %arg3: memref<1x4x1xf32, #tpu.memory_space<vmem>>, %arg4: memref<1x1x1xf32, #tpu.memory_space<vmem>>) attributes {dimension_semantics = [#tpu.dimension_semantics<parallel>], iteration_bounds = array<i64: 2>, scalar_prefetch = 0 : i64, scratch_operands = 0 : i64, tpu.core_type = #tpu.core_type<tc>, window_params = [{transform_indices = @transform_0, window_bounds = array<i64: 1, 4, 1681>}, {pipeline_mode = #tpu.pipeline_mode<synchronous>, transform_indices = @transform_1, window_bounds = array<i64: 2, 1681>}, {transform_indices = @transform_2, window_bounds = array<i64: 1, 4, 1>}, {transform_indices = @transform_3, window_bounds = array<i64: 1, 1, 1>}]} {
    %c0 = arith.constant 0 : index
    %c0_0 = arith.constant 0 : index
    %c0_1 = arith.constant 0 : index
    %0 = vector.load %arg1[%c0, %c0_0, %c0_1] : memref<1x4x1681xf32, #tpu.memory_space<vmem>>, vector<1x4x1681xf32>
    %1 = vector.shape_cast %0 : vector<1x4x1681xf32> to vector<4x1681xf32>
    %c0_2 = arith.constant 0 : index
    %c0_3 = arith.constant 0 : index
    %2 = vector.load %arg2[%c0_2, %c0_3] : memref<2x1681xf32, #tpu.memory_space<vmem>>, vector<1x1681xf32>
    %c1 = arith.constant 1 : index
    %c0_4 = arith.constant 0 : index
    %3 = vector.load %arg2[%c1, %c0_4] : memref<2x1681xf32, #tpu.memory_space<vmem>>, vector<1x1681xf32>
    %4 = vector.broadcast %2 : vector<1x1681xf32> to vector<4x1681xf32>
    %5 = arith.mulf %1, %4 : vector<4x1681xf32>
    %cst = arith.constant dense<0.000000e+00> : vector<4xf32>
    %6 = vector.multi_reduction <add>, %5, %cst [1] : vector<4x1681xf32> to vector<4xf32>
    %7 = vector.shape_cast %6 : vector<4xf32> to vector<4x1xf32>
    %8 = vector.broadcast %3 : vector<1x1681xf32> to vector<4x1681xf32>
    %9 = arith.mulf %1, %8 : vector<4x1681xf32>
    %cst_5 = arith.constant dense<0.000000e+00> : vector<4xf32>
    %10 = vector.multi_reduction <add>, %9, %cst_5 [1] : vector<4x1681xf32> to vector<4xf32>
    %11 = vector.shape_cast %10 : vector<4xf32> to vector<4x1xf32>
    %cst_6 = arith.constant dense<0xFF800000> : vector<4xf32>
    %12 = vector.multi_reduction <maximumf>, %1, %cst_6 [1] : vector<4x1681xf32> to vector<4xf32>
    %13 = vector.shape_cast %12 : vector<4xf32> to vector<4x1xf32>
    %c0_7 = arith.constant 0 : index
    %c0_8 = arith.constant 0 : index
    %c0_9 = arith.constant 0 : index
    %14 = vector.load %arg3[%c0_7, %c0_8, %c0_9] : memref<1x4x1xf32, #tpu.memory_space<vmem>>, vector<1x4x1xf32>
    %15 = vector.shape_cast %14 : vector<1x4x1xf32> to vector<4x1xf32>
    %cst_10 = arith.constant 5.000000e-01 : f32
    %16 = vector.broadcast %cst_10 : f32 to vector<4x1xf32>
    %17 = arith.cmpf ogt, %15, %16 : vector<4x1xf32>
    %18 = tpu.iota {dimensions = array<i32: 0>} : vector<4x1xi32>
    %c0_i32 = arith.constant 0 : i32
    %19 = vector.broadcast %c0_i32 : i32 to vector<4x1xi32>
    %20 = arith.cmpi eq, %18, %19 : vector<4x1xi32>
    %21 = arith.andi %17, %20 : vector<4x1xi1>
    %cst_11 = arith.constant dense<true> : vector<4x1xi1>
    %22 = arith.xori %20, %cst_11 : vector<4x1xi1>
    %23 = arith.andi %17, %22 : vector<4x1xi1>
    %cst_12 = arith.constant dense<true> : vector<4x1xi1>
    %24 = arith.xori %17, %cst_12 : vector<4x1xi1>
    %25 = arith.extui %23 : vector<4x1xi1> to vector<4x1xi32>
    %26 = arith.sitofp %25 : vector<4x1xi32> to vector<4x1xf32>
    %cst_13 = arith.constant dense<0.000000e+00> : vector<1xf32>
    %27 = vector.multi_reduction <add>, %26, %cst_13 [0] : vector<4x1xf32> to vector<1xf32>
    %28 = vector.shape_cast %27 : vector<1xf32> to vector<1x1xf32>
    %29 = arith.extui %24 : vector<4x1xi1> to vector<4x1xi32>
    %30 = arith.sitofp %29 : vector<4x1xi32> to vector<4x1xf32>
    %cst_14 = arith.constant dense<0.000000e+00> : vector<1xf32>
    %31 = vector.multi_reduction <add>, %30, %cst_14 [0] : vector<4x1xf32> to vector<1xf32>
    %32 = vector.shape_cast %31 : vector<1xf32> to vector<1x1xf32>
    %33 = math.log %7 : vector<4x1xf32>
    %cst_15 = arith.constant 0.000000e+00 : f32
    %34 = vector.broadcast %cst_15 : f32 to vector<4x1xf32>
    %35 = arith.subf %34, %33 : vector<4x1xf32>
    %cst_16 = arith.constant 0.000000e+00 : f32
    %36 = vector.broadcast %cst_16 : f32 to vector<4x1xf32>
    %37 = arith.select %21, %35, %36 : vector<4x1xi1>, vector<4x1xf32>
    %cst_17 = arith.constant dense<0.000000e+00> : vector<1xf32>
    %38 = vector.multi_reduction <add>, %37, %cst_17 [0] : vector<4x1xf32> to vector<1xf32>
    %39 = vector.shape_cast %38 : vector<1xf32> to vector<1x1xf32>
    %40 = math.log %11 : vector<4x1xf32>
    %cst_18 = arith.constant 0.000000e+00 : f32
    %41 = vector.broadcast %cst_18 : f32 to vector<4x1xf32>
    %42 = arith.subf %41, %40 : vector<4x1xf32>
    %cst_19 = arith.constant 0.000000e+00 : f32
    %43 = vector.broadcast %cst_19 : f32 to vector<4x1xf32>
    %44 = arith.select %23, %42, %43 : vector<4x1xi1>, vector<4x1xf32>
    %cst_20 = arith.constant dense<0.000000e+00> : vector<1xf32>
    %45 = vector.multi_reduction <add>, %44, %cst_20 [0] : vector<4x1xf32> to vector<1xf32>
    %46 = vector.shape_cast %45 : vector<1xf32> to vector<1x1xf32>
    %47 = math.log %13 : vector<4x1xf32>
    %cst_21 = arith.constant 0.000000e+00 : f32
    %48 = vector.broadcast %cst_21 : f32 to vector<4x1xf32>
    %49 = arith.subf %48, %47 : vector<4x1xf32>
    %cst_22 = arith.constant 0.000000e+00 : f32
    %50 = vector.broadcast %cst_22 : f32 to vector<4x1xf32>
    %51 = arith.select %24, %49, %50 : vector<4x1xi1>, vector<4x1xf32>
    %cst_23 = arith.constant dense<0.000000e+00> : vector<1xf32>
    %52 = vector.multi_reduction <add>, %51, %cst_23 [0] : vector<4x1xf32> to vector<1xf32>
    %53 = vector.shape_cast %52 : vector<1xf32> to vector<1x1xf32>
    %54 = arith.divf %46, %28 : vector<1x1xf32>
    %55 = arith.addf %39, %54 : vector<1x1xf32>
    %56 = arith.divf %53, %32 : vector<1x1xf32>
    %57 = arith.addf %55, %56 : vector<1x1xf32>
    %c0_24 = arith.constant 0 : index
    %c0_25 = arith.constant 0 : index
    %c0_26 = arith.constant 0 : index
    %58 = vector.load %arg4[%c0_24, %c0_25, %c0_26] : memref<1x1x1xf32, #tpu.memory_space<vmem>>, vector<1x1x1xf32>
    %59 = vector.shape_cast %58 : vector<1x1x1xf32> to vector<1x1xf32>
    %60 = vector.shape_cast %57 : vector<1x1xf32> to vector<1x1x1xf32>
    tpu.vector_store %arg4[%c0_24, %c0_25, %c0_26], %60 {strides = array<i32>} : memref<1x1x1xf32, #tpu.memory_space<vmem>>, vector<1x1x1xf32>,
    return
  }
  func.func @transform_0(%arg0: i32) -> (i32, i32, i32) {
    %c0_i32 = arith.constant 0 : i32
    %c0_i32_0 = arith.constant 0 : i32
    %c0_i32_1 = arith.constant 0 : i32
    return %arg0, %c0_i32, %c0_i32_0 : i32, i32, i32
  }
  func.func @transform_1(%arg0: i32) -> (i32, i32) {
    %c0_i32 = arith.constant 0 : i32
    %c0_i32_0 = arith.constant 0 : i32
    %c0_i32_1 = arith.constant 0 : i32
    return %c0_i32, %c0_i32_0 : i32, i32
  }
  func.func @transform_2(%arg0: i32) -> (i32, i32, i32) {
    %c0_i32 = arith.constant 0 : i32
    %c0_i32_0 = arith.constant 0 : i32
    %c0_i32_1 = arith.constant 0 : i32
    return %arg0, %c0_i32, %c0_i32_0 : i32, i32, i32
  }
  func.func @transform_3(%arg0: i32) -> (i32, i32, i32) {
    %c0_i32 = arith.constant 0 : i32
    %c0_i32_0 = arith.constant 0 : i32
    %c0_i32_1 = arith.constant 0 : i32
    return %arg0, %c0_i32, %c0_i32_0 : i32, i32, i32
  }
}

</mosaic_0001>

<llo_original>
// kernel: neg.0
$region0: #{neg.0}
  #allocation2 [shape = 's32[1]{0}', space=sflag, size = 0x4, scoped, tag = 'scoped memory for neg.0']
  %s0 = inlined_call_operand.hbm [shape: f32[2,4,41,41], index: 0, kind: input, shape index: {}]
  %s1 = inlined_call_operand.vmem [shape: f32[2,4,41,41], index: 1, kind: output, shape index: {}]
  $region1: #{neg.0} parent=0
    #allocation0 [shape = 'u8[167936]{0}', space=vmem, size = 0x29000, scoped, tag = 'operand span for operand 0']
    #allocation1 [shape = 's32[1]{0}', space=sflag, size = 0x4, scoped, tag = 'scoped memory for neg.0']
    %2 = vsyncpa [#allocation1], 0
    %s4 = ssub.s32 5248, 5248
    %5 = vsyncadd [#allocation1], %s4
    %s6 = sshll.u32 [#allocation0], 4
    %s7 = int_to_ptr.vmem [resolvable:$true] %s6
    %12 = dma.hbm_to_vmem [thread:$0]  %s0, 5248, %s7, [#allocation1], 64, 64, 4
    %13 = dma.done [#allocation1], 5248
    %v14 = vld [vmem:[#allocation0] sm:$0xf]
    %15 = xla_tuple %v14
    %16 = xla_tuple %15
    %v17 = vxor.u32 %v14, 2147483648
    %18 = xla_tuple %v17
    %19 = vst [vmem:[%s1] sm:$0xf] %v17
    %s20 = scalar_lea.vmem [#allocation0], 164
    %v21 = vld [vmem:[%s20] sm:$0xf]
    %22 = xla_tuple %v21
    %23 = xla_tuple %22
    %v24 = vxor.u32 %v21, 2147483648
    %25 = xla_tuple %v24
    %s26 = scalar_lea.vmem %s1, 164
    %27 = vst [vmem:[%s26] sm:$0xf] %v24
    %s28 = scalar_lea.vmem [#allocation0], 4
    %v29 = vld [vmem:[%s28] sm:$0xf]
    %30 = xla_tuple %v29
    %31 = xla_tuple %30
    %v32 = vxor.u32 %v29, 2147483648
    %33 = xla_tuple %v32
    %s34 = scalar_lea.vmem %s1, 4
    %35 = vst [vmem:[%s34] sm:$0xf] %v32
    %s36 = scalar_lea.vmem [#allocation0], 168
    %v37 = vld [vmem:[%s36] sm:$0xf]
    %38 = xla_tuple %v37
    %39 = xla_tuple %38
    %v40 = vxor.u32 %v37, 2147483648
    %41 = xla_tuple %v40
    %s42 = scalar_lea.vmem %s1, 168
    %43 = vst [vmem:[%s42] sm:$0xf] %v40
    %s44 = scalar_lea.vmem [#allocation0], 8
    %v45 = vld [vmem:[%s44] sm:$0xf]
    %46 = xla_tuple %v45
    %47 = xla_tuple %46
    %v48 = vxor.u32 %v45, 2147483648
    %49 = xla_tuple %v48
    %s50 = scalar_lea.vmem %s1, 8
    %51 = vst [vmem:[%s50] sm:$0xf] %v48
    %s52 = scalar_lea.vmem [#allocation0], 172
    %v53 = vld [vmem:[%s52] sm:$0xf]
    %54 = xla_tuple %v53
    %55 = xla_tuple %54
    %v56 = vxor.u32 %v53, 2147483648
    %57 = xla_tuple %v56
    %s58 = scalar_lea.vmem %s1, 172
    %59 = vst [vmem:[%s58] sm:$0xf] %v56
    %s60 = scalar_lea.vmem [#allocation0], 12
    %v61 = vld [vmem:[%s60] sm:$0xf]
    %62 = xla_tuple %v61
    %63 = xla_tuple %62
    %v64 = vxor.u32 %v61, 2147483648
    %65 = xla_tuple %v64
    %s66 = scalar_lea.vmem %s1, 12
    %67 = vst [vmem:[%s66] sm:$0xf] %v64
    %s68 = scalar_lea.vmem [#allocation0], 176
    %v69 = vld [vmem:[%s68] sm:$0xf]
    %70 = xla_tuple %v69
    %71 = xla_tuple %70
    %v72 = vxor.u32 %v69, 2147483648
    %73 = xla_tuple %v72
    %s74 = scalar_lea.vmem %s1, 176
    %75 = vst [vmem:[%s74] sm:$0xf] %v72
    %s76 = scalar_lea.vmem [#allocation0], 16
    %v77 = vld [vmem:[%s76] sm:$0xf]
    %78 = xla_tuple %v77
    %79 = xla_tuple %78
    %v80 = vxor.u32 %v77, 2147483648
    %81 = xla_tuple %v80
    %s82 = scalar_lea.vmem %s1, 16
    %83 = vst [vmem:[%s82] sm:$0xf] %v80
    %s84 = scalar_lea.vmem [#allocation0], 180
    %v85 = vld [vmem:[%s84] sm:$0xf]
    %86 = xla_tuple %v85
    %87 = xla_tuple %86
    %v88 = vxor.u32 %v85, 2147483648
    %89 = xla_tuple %v88
    %s90 = scalar_lea.vmem %s1, 180
    %91 = vst [vmem:[%s90] sm:$0xf] %v88
    %s92 = scalar_lea.vmem [#allocation0], 20
    %v93 = vld [vmem:[%s92] sm:$0xf]
    %94 = xla_tuple %v93
    %95 = xla_tuple %94
    %v96 = vxor.u32 %v93, 2147483648
    %97 = xla_tuple %v96
    %s98 = scalar_lea.vmem %s1, 20
    %99 = vst [vmem:[%s98] sm:$0xf] %v96
    %s100 = scalar_lea.vmem [#allocation0], 184
    %v101 = vld [vmem:[%s100] sm:$0xf]
    %102 = xla_tuple %v101
    %103 = xla_tuple %102
    %v104 = vxor.u32 %v101, 2147483648
    %105 = xla_tuple %v104
    %s106 = scalar_lea.vmem %s1, 184
    %107 = vst [vmem:[%s106] sm:$0xf] %v104
    %s108 = scalar_lea.vmem [#allocation0], 24
    %v109 = vld [vmem:[%s108] sm:$0xf]
    %110 = xla_tuple %v109
    %111 = xla_tuple %110
    %v112 = vxor.u32 %v109, 2147483648
    %113 = xla_tuple %v112
    %s114 = scalar_lea.vmem %s1, 24
    %115 = vst [vmem:[%s114] sm:$0xf] %v112
    %s116 = scalar_lea.vmem [#allocation0], 188
    %v117 = vld [vmem:[%s116] sm:$0xf]
    %118 = xla_tuple %v117
    %119 = xla_tuple %118
    %v120 = vxor.u32 %v117, 2147483648
    %121 = xla_tuple %v120
    %s122 = scalar_lea.vmem %s1, 188
    %123 = vst [vmem:[%s122] sm:$0xf] %v120
    %s124 = scalar_lea.vmem [#allocation0], 28
    %v125 = vld [vmem:[%s124] sm:$0xf]
    %126 = xla_tuple %v125
    %127 = xla_tuple %126
    %v128 = vxor.u32 %v125, 2147483648
    %129 = xla_tuple %v128
    %s130 = scalar_lea.vmem %s1, 28
    %131 = vst [vmem:[%s130] sm:$0xf] %v128
    %s132 = scalar_lea.vmem [#allocation0], 192
    %v133 = vld [vmem:[%s132] sm:$0xf]
    %134 = xla_tuple %v133
    %135 = xla_tuple %134
    %v136 = vxor.u32 %v133, 2147483648
    %137 = xla_tuple %v136
    %s138 = scalar_lea.vmem %s1, 192
    %139 = vst [vmem:[%s138] sm:$0xf] %v136
    %s140 = scalar_lea.vmem [#allocation0], 32
    %v141 = vld [vmem:[%s140] sm:$0xf]
    %142 = xla_tuple %v141
    %143 = xla_tuple %142
    %v144 = vxor.u32 %v141, 2147483648
    %145 = xla_tuple %v144
    %s146 = scalar_lea.vmem %s1, 32
    %147 = vst [vmem:[%s146] sm:$0xf] %v144
    %s148 = scalar_lea.vmem [#allocation0], 196
    %v149 = vld [vmem:[%s148] sm:$0xf]
    %150 = xla_tuple %v149
    %151 = xla_tuple %150
    %v152 = vxor.u32 %v149, 2147483648
    %153 = xla_tuple %v152
    %s154 = scalar_lea.vmem %s1, 196
    %155 = vst [vmem:[%s154] sm:$0xf] %v152
    %s156 = scalar_lea.vmem [#allocation0], 36
    %v157 = vld [vmem:[%s156] sm:$0xf]
    %158 = xla_tuple %v157
    %159 = xla_tuple %158
    %v160 = vxor.u32 %v157, 2147483648
    %161 = xla_tuple %v160
    %s162 = scalar_lea.vmem %s1, 36
    %163 = vst [vmem:[%s162] sm:$0xf] %v160
    %s164 = scalar_lea.vmem [#allocation0], 200
    %v165 = vld [vmem:[%s164] sm:$0xf]
    %166 = xla_tuple %v165
    %167 = xla_tuple %166
    %v168 = vxor.u32 %v165, 2147483648
    %169 = xla_tuple %v168
    %s170 = scalar_lea.vmem %s1, 200
    %171 = vst [vmem:[%s170] sm:$0xf] %v168
    %s172 = scalar_lea.vmem [#allocation0], 40
    %v173 = vld [vmem:[%s172] sm:$0xf]
    %174 = xla_tuple %v173
    %175 = xla_tuple %174
    %v176 = vxor.u32 %v173, 2147483648
    %177 = xla_tuple %v176
    %s178 = scalar_lea.vmem %s1, 40
    %179 = vst [vmem:[%s178] sm:$0xf] %v176
    %s180 = scalar_lea.vmem [#allocation0], 204
    %v181 = vld [vmem:[%s180] sm:$0xf]
    %182 = xla_tuple %v181
    %183 = xla_tuple %182
    %v184 = vxor.u32 %v181, 2147483648
    %185 = xla_tuple %v184
    %s186 = scalar_lea.vmem %s1, 204
    %187 = vst [vmem:[%s186] sm:$0xf] %v184
    %s188 = scalar_lea.vmem [#allocation0], 44
    %v189 = vld [vmem:[%s188] sm:$0xf]
    %190 = xla_tuple %v189
    %191 = xla_tuple %190
    %v192 = vxor.u32 %v189, 2147483648
    %193 = xla_tuple %v192
    %s194 = scalar_lea.vmem %s1, 44
    %195 = vst [vmem:[%s194] sm:$0xf] %v192
    %s196 = scalar_lea.vmem [#allocation0], 208
    %v197 = vld [vmem:[%s196] sm:$0xf]
    %198 = xla_tuple %v197
    %199 = xla_tuple %198
    %v200 = vxor.u32 %v197, 2147483648
    %201 = xla_tuple %v200
    %s202 = scalar_lea.vmem %s1, 208
    %203 = vst [vmem:[%s202] sm:$0xf] %v200
    %s204 = scalar_lea.vmem [#allocation0], 48
    %v205 = vld [vmem:[%s204] sm:$0xf]
    %206 = xla_tuple %v205
    %207 = xla_tuple %206
    %v208 = vxor.u32 %v205, 2147483648
    %209 = xla_tuple %v208
    %s210 = scalar_lea.vmem %s1, 48
    %211 = vst [vmem:[%s210] sm:$0xf] %v208
    %s212 = scalar_lea.vmem [#allocation0], 212
    %v213 = vld [vmem:[%s212] sm:$0xf]
    %214 = xla_tuple %v213
    %215 = xla_tuple %214
    %v216 = vxor.u32 %v213, 2147483648
    %217 = xla_tuple %v216
    %s218 = scalar_lea.vmem %s1, 212
    %219 = vst [vmem:[%s218] sm:$0xf] %v216
    %s220 = scalar_lea.vmem [#allocation0], 52
    %v221 = vld [vmem:[%s220] sm:$0xf]
    %222 = xla_tuple %v221
    %223 = xla_tuple %222
    %v224 = vxor.u32 %v221, 2147483648
    %225 = xla_tuple %v224
    %s226 = scalar_lea.vmem %s1, 52
    %227 = vst [vmem:[%s226] sm:$0xf] %v224
    %s228 = scalar_lea.vmem [#allocation0], 216
    %v229 = vld [vmem:[%s228] sm:$0xf]
    %230 = xla_tuple %v229
    %231 = xla_tuple %230
    %v232 = vxor.u32 %v229, 2147483648
    %233 = xla_tuple %v232
    %s234 = scalar_lea.vmem %s1, 216
    %235 = vst [vmem:[%s234] sm:$0xf] %v232
    %s236 = scalar_lea.vmem [#allocation0], 56
    %v237 = vld [vmem:[%s236] sm:$0xf]
    %238 = xla_tuple %v237
    %239 = xla_tuple %238
    %v240 = vxor.u32 %v237, 2147483648
    %241 = xla_tuple %v240
    %s242 = scalar_lea.vmem %s1, 56
    %243 = vst [vmem:[%s242] sm:$0xf] %v240
    %s244 = scalar_lea.vmem [#allocation0], 220
    %v245 = vld [vmem:[%s244] sm:$0xf]
    %246 = xla_tuple %v245
    %247 = xla_tuple %246
    %v248 = vxor.u32 %v245, 2147483648
    %249 = xla_tuple %v248
    %s250 = scalar_lea.vmem %s1, 220
    %251 = vst [vmem:[%s250] sm:$0xf] %v248
    %s252 = scalar_lea.vmem [#allocation0], 60
    %v253 = vld [vmem:[%s252] sm:$0xf]
    %254 = xla_tuple %v253
    %255 = xla_tuple %254
    %v256 = vxor.u32 %v253, 2147483648
    %257 = xla_tuple %v256
    %s258 = scalar_lea.vmem %s1, 60
    %259 = vst [vmem:[%s258] sm:$0xf] %v256
    %s260 = scalar_lea.vmem [#allocation0], 224
    %v261 = vld [vmem:[%s260] sm:$0xf]
    %262 = xla_tuple %v261
    %263 = xla_tuple %262
    %v264 = vxor.u32 %v261, 2147483648
    %265 = xla_tuple %v264
    %s266 = scalar_lea.vmem %s1, 224
    %267 = vst [vmem:[%s266] sm:$0xf] %v264
    %s268 = scalar_lea.vmem [#allocation0], 64
    %v269 = vld [vmem:[%s268] sm:$0xf]
    %270 = xla_tuple %v269
    %271 = xla_tuple %270
    %v272 = vxor.u32 %v269, 2147483648
    %273 = xla_tuple %v272
    %s274 = scalar_lea.vmem %s1, 64
    %275 = vst [vmem:[%s274] sm:$0xf] %v272
    %s276 = scalar_lea.vmem [#allocation0], 228
    %v277 = vld [vmem:[%s276] sm:$0xf]
    %278 = xla_tuple %v277
    %279 = xla_tuple %278
    %v280 = vxor.u32 %v277, 2147483648
    %281 = xla_tuple %v280
    %s282 = scalar_lea.vmem %s1, 228
    %283 = vst [vmem:[%s282] sm:$0xf] %v280
    %s284 = scalar_lea.vmem [#allocation0], 68
    %v285 = vld [vmem:[%s284] sm:$0xf]
    %286 = xla_tuple %v285
    %287 = xla_tuple %286
    %v288 = vxor.u32 %v285, 2147483648
    %289 = xla_tuple %v288
    %s290 = scalar_lea.vmem %s1, 68
    %291 = vst [vmem:[%s290] sm:$0xf] %v288
    %s292 = scalar_lea.vmem [#allocation0], 232
    %v293 = vld [vmem:[%s292] sm:$0xf]
    %294 = xla_tuple %v293
    %295 = xla_tuple %294
    %v296 = vxor.u32 %v293, 2147483648
    %297 = xla_tuple %v296
    %s298 = scalar_lea.vmem %s1, 232
    %299 = vst [vmem:[%s298] sm:$0xf] %v296
    %s300 = scalar_lea.vmem [#allocation0], 72
    %v301 = vld [vmem:[%s300] sm:$0xf]
    %302 = xla_tuple %v301
    %303 = xla_tuple %302
    %v304 = vxor.u32 %v301, 2147483648
    %305 = xla_tuple %v304
    %s306 = scalar_lea.vmem %s1, 72
    %307 = vst [vmem:[%s306] sm:$0xf] %v304
    %s308 = scalar_lea.vmem [#allocation0], 236
    %v309 = vld [vmem:[%s308] sm:$0xf]
    %310 = xla_tuple %v309
    %311 = xla_tuple %310
    %v312 = vxor.u32 %v309, 2147483648
    %313 = xla_tuple %v312
    %s314 = scalar_lea.vmem %s1, 236
    %315 = vst [vmem:[%s314] sm:$0xf] %v312
    %s316 = scalar_lea.vmem [#allocation0], 76
    %v317 = vld [vmem:[%s316] sm:$0xf]
    %318 = xla_tuple %v317
    %319 = xla_tuple %318
    %v320 = vxor.u32 %v317, 2147483648
    %321 = xla_tuple %v320
    %s322 = scalar_lea.vmem %s1, 76
    %323 = vst [vmem:[%s322] sm:$0xf] %v320
    %s324 = scalar_lea.vmem [#allocation0], 240
    %v325 = vld [vmem:[%s324] sm:$0xf]
    %326 = xla_tuple %v325
    %327 = xla_tuple %326
    %v328 = vxor.u32 %v325, 2147483648
    %329 = xla_tuple %v328
    %s330 = scalar_lea.vmem %s1, 240
    %331 = vst [vmem:[%s330] sm:$0xf] %v328
    %s332 = scalar_lea.vmem [#allocation0], 80
    %v333 = vld [vmem:[%s332] sm:$0xf]
    %334 = xla_tuple %v333
    %335 = xla_tuple %334
    %v336 = vxor.u32 %v333, 2147483648
    %337 = xla_tuple %v336
    %s338 = scalar_lea.vmem %s1, 80
    %339 = vst [vmem:[%s338] sm:$0xf] %v336
    %s340 = scalar_lea.vmem [#allocation0], 244
    %v341 = vld [vmem:[%s340] sm:$0xf]
    %342 = xla_tuple %v341
    %343 = xla_tuple %342
    %v344 = vxor.u32 %v341, 2147483648
    %345 = xla_tuple %v344
    %s346 = scalar_lea.vmem %s1, 244
    %347 = vst [vmem:[%s346] sm:$0xf] %v344
    %s348 = scalar_lea.vmem [#allocation0], 84
    %v349 = vld [vmem:[%s348] sm:$0xf]
    %350 = xla_tuple %v349
    %351 = xla_tuple %350
    %v352 = vxor.u32 %v349, 2147483648
    %353 = xla_tuple %v352
    %s354 = scalar_lea.vmem %s1, 84
    %355 = vst [vmem:[%s354] sm:$0xf] %v352
    %s356 = scalar_lea.vmem [#allocation0], 248
    %v357 = vld [vmem:[%s356] sm:$0xf]
    %358 = xla_tuple %v357
    %359 = xla_tuple %358
    %v360 = vxor.u32 %v357, 2147483648
    %361 = xla_tuple %v360
    %s362 = scalar_lea.vmem %s1, 248
    %363 = vst [vmem:[%s362] sm:$0xf] %v360
    %s364 = scalar_lea.vmem [#allocation0], 88
    %v365 = vld [vmem:[%s364] sm:$0xf]
    %366 = xla_tuple %v365
    %367 = xla_tuple %366
    %v368 = vxor.u32 %v365, 2147483648
    %369 = xla_tuple %v368
    %s370 = scalar_lea.vmem %s1, 88
    %371 = vst [vmem:[%s370] sm:$0xf] %v368
    %s372 = scalar_lea.vmem [#allocation0], 252
    %v373 = vld [vmem:[%s372] sm:$0xf]
    %374 = xla_tuple %v373
    %375 = xla_tuple %374
    %v376 = vxor.u32 %v373, 2147483648
    %377 = xla_tuple %v376
    %s378 = scalar_lea.vmem %s1, 252
    %379 = vst [vmem:[%s378] sm:$0xf] %v376
    %s380 = scalar_lea.vmem [#allocation0], 92
    %v381 = vld [vmem:[%s380] sm:$0xf]
    %382 = xla_tuple %v381
    %383 = xla_tuple %382
    %v384 = vxor.u32 %v381, 2147483648
    %385 = xla_tuple %v384
    %s386 = scalar_lea.vmem %s1, 92
    %387 = vst [vmem:[%s386] sm:$0xf] %v384
    %s388 = scalar_lea.vmem [#allocation0], 256
    %v389 = vld [vmem:[%s388] sm:$0xf]
    %390 = xla_tuple %v389
    %391 = xla_tuple %390
    %v392 = vxor.u32 %v389, 2147483648
    %393 = xla_tuple %v392
    %s394 = scalar_lea.vmem %s1, 256
    %395 = vst [vmem:[%s394] sm:$0xf] %v392
    %s396 = scalar_lea.vmem [#allocation0], 96
    %v397 = vld [vmem:[%s396] sm:$0xf]
    %398 = xla_tuple %v397
    %399 = xla_tuple %398
    %v400 = vxor.u32 %v397, 2147483648
    %401 = xla_tuple %v400
    %s402 = scalar_lea.vmem %s1, 96
    %403 = vst [vmem:[%s402] sm:$0xf] %v400
    %s404 = scalar_lea.vmem [#allocation0], 260
    %v405 = vld [vmem:[%s404] sm:$0xf]
    %406 = xla_tuple %v405
    %407 = xla_tuple %406
    %v408 = vxor.u32 %v405, 2147483648
    %409 = xla_tuple %v408
    %s410 = scalar_lea.vmem %s1, 260
    %411 = vst [vmem:[%s410] sm:$0xf] %v408
    %s412 = scalar_lea.vmem [#allocation0], 100
    %v413 = vld [vmem:[%s412] sm:$0xf]
    %414 = xla_tuple %v413
    %415 = xla_tuple %414
    %v416 = vxor.u32 %v413, 2147483648
    %417 = xla_tuple %v416
    %s418 = scalar_lea.vmem %s1, 100
    %419 = vst [vmem:[%s418] sm:$0xf] %v416
    %s420 = scalar_lea.vmem [#allocation0], 264
    %v421 = vld [vmem:[%s420] sm:$0xf]
    %422 = xla_tuple %v421
    %423 = xla_tuple %422
    %v424 = vxor.u32 %v421, 2147483648
    %425 = xla_tuple %v424
    %s426 = scalar_lea.vmem %s1, 264
    %427 = vst [vmem:[%s426] sm:$0xf] %v424
    %s428 = scalar_lea.vmem [#allocation0], 104
    %v429 = vld [vmem:[%s428] sm:$0xf]
    %430 = xla_tuple %v429
    %431 = xla_tuple %430
    %v432 = vxor.u32 %v429, 2147483648
    %433 = xla_tuple %v432
    %s434 = scalar_lea.vmem %s1, 104
    %435 = vst [vmem:[%s434] sm:$0xf] %v432
    %s436 = scalar_lea.vmem [#allocation0], 268
    %v437 = vld [vmem:[%s436] sm:$0xf]
    %438 = xla_tuple %v437
    %439 = xla_tuple %438
    %v440 = vxor.u32 %v437, 2147483648
    %441 = xla_tuple %v440
    %s442 = scalar_lea.vmem %s1, 268
    %443 = vst [vmem:[%s442] sm:$0xf] %v440
    %s444 = scalar_lea.vmem [#allocation0], 108
    %v445 = vld [vmem:[%s444] sm:$0xf]
    %446 = xla_tuple %v445
    %447 = xla_tuple %446
    %v448 = vxor.u32 %v445, 2147483648
    %449 = xla_tuple %v448
    %s450 = scalar_lea.vmem %s1, 108
    %451 = vst [vmem:[%s450] sm:$0xf] %v448
    %s452 = scalar_lea.vmem [#allocation0], 272
    %v453 = vld [vmem:[%s452] sm:$0xf]
    %454 = xla_tuple %v453
    %455 = xla_tuple %454
    %v456 = vxor.u32 %v453, 2147483648
    %457 = xla_tuple %v456
    %s458 = scalar_lea.vmem %s1, 272
    %459 = vst [vmem:[%s458] sm:$0xf] %v456
    %s460 = scalar_lea.vmem [#allocation0], 112
    %v461 = vld [vmem:[%s460] sm:$0xf]
    %462 = xla_tuple %v461
    %463 = xla_tuple %462
    %v464 = vxor.u32 %v461, 2147483648
    %465 = xla_tuple %v464
    %s466 = scalar_lea.vmem %s1, 112
    %467 = vst [vmem:[%s466] sm:$0xf] %v464
    %s468 = scalar_lea.vmem [#allocation0], 276
    %v469 = vld [vmem:[%s468] sm:$0xf]
    %470 = xla_tuple %v469
    %471 = xla_tuple %470
    %v472 = vxor.u32 %v469, 2147483648
    %473 = xla_tuple %v472
    %s474 = scalar_lea.vmem %s1, 276
    %475 = vst [vmem:[%s474] sm:$0xf] %v472
    %s476 = scalar_lea.vmem [#allocation0], 116
    %v477 = vld [vmem:[%s476] sm:$0xf]
    %478 = xla_tuple %v477
    %479 = xla_tuple %478
    %v480 = vxor.u32 %v477, 2147483648
    %481 = xla_tuple %v480
    %s482 = scalar_lea.vmem %s1, 116
    %483 = vst [vmem:[%s482] sm:$0xf] %v480
    %s484 = scalar_lea.vmem [#allocation0], 280
    %v485 = vld [vmem:[%s484] sm:$0xf]
    %486 = xla_tuple %v485
    %487 = xla_tuple %486
    %v488 = vxor.u32 %v485, 2147483648
    %489 = xla_tuple %v488
    %s490 = scalar_lea.vmem %s1, 280
    %491 = vst [vmem:[%s490] sm:$0xf] %v488
    %s492 = scalar_lea.vmem [#allocation0], 120
    %v493 = vld [vmem:[%s492] sm:$0xf]
    %494 = xla_tuple %v493
    %495 = xla_tuple %494
    %v496 = vxor.u32 %v493, 2147483648
    %497 = xla_tuple %v496
    %s498 = scalar_lea.vmem %s1, 120
    %499 = vst [vmem:[%s498] sm:$0xf] %v496
    %s500 = scalar_lea.vmem [#allocation0], 284
    %v501 = vld [vmem:[%s500] sm:$0xf]
    %502 = xla_tuple %v501
    %503 = xla_tuple %502
    %v504 = vxor.u32 %v501, 2147483648
    %505 = xla_tuple %v504
    %s506 = scalar_lea.vmem %s1, 284
    %507 = vst [vmem:[%s506] sm:$0xf] %v504
    %s508 = scalar_lea.vmem [#allocation0], 124
    %v509 = vld [vmem:[%s508] sm:$0xf]
    %510 = xla_tuple %v509
    %511 = xla_tuple %510
    %v512 = vxor.u32 %v509, 2147483648
    %513 = xla_tuple %v512
    %s514 = scalar_lea.vmem %s1, 124
    %515 = vst [vmem:[%s514] sm:$0xf] %v512
    %s516 = scalar_lea.vmem [#allocation0], 288
    %v517 = vld [vmem:[%s516] sm:$0xf]
    %518 = xla_tuple %v517
    %519 = xla_tuple %518
    %v520 = vxor.u32 %v517, 2147483648
    %521 = xla_tuple %v520
    %s522 = scalar_lea.vmem %s1, 288
    %523 = vst [vmem:[%s522] sm:$0xf] %v520
    %s524 = scalar_lea.vmem [#allocation0], 128
    %v525 = vld [vmem:[%s524] sm:$0xf]
    %526 = xla_tuple %v525
    %527 = xla_tuple %526
    %v528 = vxor.u32 %v525, 2147483648
    %529 = xla_tuple %v528
    %s530 = scalar_lea.vmem %s1, 128
    %531 = vst [vmem:[%s530] sm:$0xf] %v528
    %s532 = scalar_lea.vmem [#allocation0], 292
    %v533 = vld [vmem:[%s532] sm:$0xf]
    %534 = xla_tuple %v533
    %535 = xla_tuple %534
    %v536 = vxor.u32 %v533, 2147483648
    %537 = xla_tuple %v536
    %s538 = scalar_lea.vmem %s1, 292
    %539 = vst [vmem:[%s538] sm:$0xf] %v536
    %s540 = scalar_lea.vmem [#allocation0], 132
    %v541 = vld [vmem:[%s540] sm:$0xf]
    %542 = xla_tuple %v541
    %543 = xla_tuple %542
    %v544 = vxor.u32 %v541, 2147483648
    %545 = xla_tuple %v544
    %s546 = scalar_lea.vmem %s1, 132
    %547 = vst [vmem:[%s546] sm:$0xf] %v544
    %s548 = scalar_lea.vmem [#allocation0], 296
    %v549 = vld [vmem:[%s548] sm:$0xf]
    %550 = xla_tuple %v549
    %551 = xla_tuple %550
    %v552 = vxor.u32 %v549, 2147483648
    %553 = xla_tuple %v552
    %s554 = scalar_lea.vmem %s1, 296
    %555 = vst [vmem:[%s554] sm:$0xf] %v552
    %s556 = scalar_lea.vmem [#allocation0], 136
    %v557 = vld [vmem:[%s556] sm:$0xf]
    %558 = xla_tuple %v557
    %559 = xla_tuple %558
    %v560 = vxor.u32 %v557, 2147483648
    %561 = xla_tuple %v560
    %s562 = scalar_lea.vmem %s1, 136
    %563 = vst [vmem:[%s562] sm:$0xf] %v560
    %s564 = scalar_lea.vmem [#allocation0], 300
    %v565 = vld [vmem:[%s564] sm:$0xf]
    %566 = xla_tuple %v565
    %567 = xla_tuple %566
    %v568 = vxor.u32 %v565, 2147483648
    %569 = xla_tuple %v568
    %s570 = scalar_lea.vmem %s1, 300
    %571 = vst [vmem:[%s570] sm:$0xf] %v568
    %s572 = scalar_lea.vmem [#allocation0], 140
    %v573 = vld [vmem:[%s572] sm:$0xf]
    %574 = xla_tuple %v573
    %575 = xla_tuple %574
    %v576 = vxor.u32 %v573, 2147483648
    %577 = xla_tuple %v576
    %s578 = scalar_lea.vmem %s1, 140
    %579 = vst [vmem:[%s578] sm:$0xf] %v576
    %s580 = scalar_lea.vmem [#allocation0], 304
    %v581 = vld [vmem:[%s580] sm:$0xf]
    %582 = xla_tuple %v581
    %583 = xla_tuple %582
    %v584 = vxor.u32 %v581, 2147483648
    %585 = xla_tuple %v584
    %s586 = scalar_lea.vmem %s1, 304
    %587 = vst [vmem:[%s586] sm:$0xf] %v584
    %s588 = scalar_lea.vmem [#allocation0], 144
    %v589 = vld [vmem:[%s588] sm:$0xf]
    %590 = xla_tuple %v589
    %591 = xla_tuple %590
    %v592 = vxor.u32 %v589, 2147483648
    %593 = xla_tuple %v592
    %s594 = scalar_lea.vmem %s1, 144
    %595 = vst [vmem:[%s594] sm:$0xf] %v592
    %s596 = scalar_lea.vmem [#allocation0], 308
    %v597 = vld [vmem:[%s596] sm:$0xf]
    %598 = xla_tuple %v597
    %599 = xla_tuple %598
    %v600 = vxor.u32 %v597, 2147483648
    %601 = xla_tuple %v600
    %s602 = scalar_lea.vmem %s1, 308
    %603 = vst [vmem:[%s602] sm:$0xf] %v600
    %s604 = scalar_lea.vmem [#allocation0], 148
    %v605 = vld [vmem:[%s604] sm:$0xf]
    %606 = xla_tuple %v605
    %607 = xla_tuple %606
    %v608 = vxor.u32 %v605, 2147483648
    %609 = xla_tuple %v608
    %s610 = scalar_lea.vmem %s1, 148
    %611 = vst [vmem:[%s610] sm:$0xf] %v608
    %s612 = scalar_lea.vmem [#allocation0], 312
    %v613 = vld [vmem:[%s612] sm:$0xf]
    %614 = xla_tuple %v613
    %615 = xla_tuple %614
    %v616 = vxor.u32 %v613, 2147483648
    %617 = xla_tuple %v616
    %s618 = scalar_lea.vmem %s1, 312
    %619 = vst [vmem:[%s618] sm:$0xf] %v616
    %s620 = scalar_lea.vmem [#allocation0], 152
    %v621 = vld [vmem:[%s620] sm:$0xf]
    %622 = xla_tuple %v621
    %623 = xla_tuple %622
    %v624 = vxor.u32 %v621, 2147483648
    %625 = xla_tuple %v624
    %s626 = scalar_lea.vmem %s1, 152
    %627 = vst [vmem:[%s626] sm:$0xf] %v624
    %s628 = scalar_lea.vmem [#allocation0], 316
    %v629 = vld [vmem:[%s628] sm:$0xf]
    %630 = xla_tuple %v629
    %631 = xla_tuple %630
    %v632 = vxor.u32 %v629, 2147483648
    %633 = xla_tuple %v632
    %s634 = scalar_lea.vmem %s1, 316
    %635 = vst [vmem:[%s634] sm:$0xf] %v632
    %s636 = scalar_lea.vmem [#allocation0], 156
    %v637 = vld [vmem:[%s636] sm:$0xf]
    %638 = xla_tuple %v637
    %639 = xla_tuple %638
    %v640 = vxor.u32 %v637, 2147483648
    %641 = xla_tuple %v640
    %s642 = scalar_lea.vmem %s1, 156
    %643 = vst [vmem:[%s642] sm:$0xf] %v640
    %s644 = scalar_lea.vmem [#allocation0], 320
    %v645 = vld [vmem:[%s644] sm:$0xf]
    %646 = xla_tuple %v645
    %647 = xla_tuple %646
    %v648 = vxor.u32 %v645, 2147483648
    %649 = xla_tuple %v648
    %s650 = scalar_lea.vmem %s1, 320
    %651 = vst [vmem:[%s650] sm:$0xf] %v648
    %s652 = scalar_lea.vmem [#allocation0], 160
    %v653 = vld [vmem:[%s652] sm:$0xf]
    %654 = xla_tuple %v653
    %655 = xla_tuple %654
    %v656 = vxor.u32 %v653, 2147483648
    %657 = xla_tuple %v656
    %s658 = scalar_lea.vmem %s1, 160
    %659 = vst [vmem:[%s658] sm:$0xf] %v656
    %s660 = scalar_lea.vmem [#allocation0], 324
    %v661 = vld [vmem:[%s660] sm:$0xf]
    %662 = xla_tuple %v661
    %663 = xla_tuple %662
    %v664 = vxor.u32 %v661, 2147483648
    %665 = xla_tuple %v664
    %s666 = scalar_lea.vmem %s1, 324
    %667 = vst [vmem:[%s666] sm:$0xf] %v664
    %668 = vsyncpa [#allocation1], 1

// kernel: neg.3
$region0: #{neg.3}
  #allocation0 [shape = 's32[1]{0}', space=sflag, size = 0x4, scoped, tag = 'scoped memory for neg.3']
  %s0 = inlined_call_operand.vmem [shape: f32[2,4,1681], index: 0, kind: input, shape index: {}]
  %s1 = inlined_call_operand.vmem [shape: f32[2,4,1681], index: 1, kind: output, shape index: {}]
  %v2 = vld [vmem:[%s0] sm:$0xf]
  %3 = xla_tuple %v2
  %4 = xla_tuple %3
  %v5 = vxor.u32 %v2, 2147483648
  %6 = xla_tuple %v5
  %7 = vst [vmem:[%s1] sm:$0xf] %v5
  %s8 = scalar_lea.vmem %s0, 56
  %v9 = vld [vmem:[%s8] sm:$0xf]
  %10 = xla_tuple %v9
  %11 = xla_tuple %10
  %v12 = vxor.u32 %v9, 2147483648
  %13 = xla_tuple %v12
  %s14 = scalar_lea.vmem %s1, 56
  %15 = vst [vmem:[%s14] sm:$0xf] %v12
  %s16 = scalar_lea.vmem %s0, 4
  %v17 = vld [vmem:[%s16] sm:$0xf]
  %18 = xla_tuple %v17
  %19 = xla_tuple %18
  %v20 = vxor.u32 %v17, 2147483648
  %21 = xla_tuple %v20
  %s22 = scalar_lea.vmem %s1, 4
  %23 = vst [vmem:[%s22] sm:$0xf] %v20
  %s24 = scalar_lea.vmem %s0, 60
  %v25 = vld [vmem:[%s24] sm:$0xf]
  %26 = xla_tuple %v25
  %27 = xla_tuple %26
  %v28 = vxor.u32 %v25, 2147483648
  %29 = xla_tuple %v28
  %s30 = scalar_lea.vmem %s1, 60
  %31 = vst [vmem:[%s30] sm:$0xf] %v28
  %s32 = scalar_lea.vmem %s0, 8
  %v33 = vld [vmem:[%s32] sm:$0xf]
  %34 = xla_tuple %v33
  %35 = xla_tuple %34
  %v36 = vxor.u32 %v33, 2147483648
  %37 = xla_tuple %v36
  %s38 = scalar_lea.vmem %s1, 8
  %39 = vst [vmem:[%s38] sm:$0xf] %v36
  %s40 = scalar_lea.vmem %s0, 64
  %v41 = vld [vmem:[%s40] sm:$0xf]
  %42 = xla_tuple %v41
  %43 = xla_tuple %42
  %v44 = vxor.u32 %v41, 2147483648
  %45 = xla_tuple %v44
  %s46 = scalar_lea.vmem %s1, 64
  %47 = vst [vmem:[%s46] sm:$0xf] %v44
  %s48 = scalar_lea.vmem %s0, 12
  %v49 = vld [vmem:[%s48] sm:$0xf]
  %50 = xla_tuple %v49
  %51 = xla_tuple %50
  %v52 = vxor.u32 %v49, 2147483648
  %53 = xla_tuple %v52
  %s54 = scalar_lea.vmem %s1, 12
  %55 = vst [vmem:[%s54] sm:$0xf] %v52
  %s56 = scalar_lea.vmem %s0, 68
  %v57 = vld [vmem:[%s56] sm:$0xf]
  %58 = xla_tuple %v57
  %59 = xla_tuple %58
  %v60 = vxor.u32 %v57, 2147483648
  %61 = xla_tuple %v60
  %s62 = scalar_lea.vmem %s1, 68
  %63 = vst [vmem:[%s62] sm:$0xf] %v60
  %s64 = scalar_lea.vmem %s0, 16
  %v65 = vld [vmem:[%s64] sm:$0xf]
  %66 = xla_tuple %v65
  %67 = xla_tuple %66
  %v68 = vxor.u32 %v65, 2147483648
  %69 = xla_tuple %v68
  %s70 = scalar_lea.vmem %s1, 16
  %71 = vst [vmem:[%s70] sm:$0xf] %v68
  %s72 = scalar_lea.vmem %s0, 72
  %v73 = vld [vmem:[%s72] sm:$0xf]
  %74 = xla_tuple %v73
  %75 = xla_tuple %74
  %v76 = vxor.u32 %v73, 2147483648
  %77 = xla_tuple %v76
  %s78 = scalar_lea.vmem %s1, 72
  %79 = vst [vmem:[%s78] sm:$0xf] %v76
  %s80 = scalar_lea.vmem %s0, 20
  %v81 = vld [vmem:[%s80] sm:$0xf]
  %82 = xla_tuple %v81
  %83 = xla_tuple %82
  %v84 = vxor.u32 %v81, 2147483648
  %85 = xla_tuple %v84
  %s86 = scalar_lea.vmem %s1, 20
  %87 = vst [vmem:[%s86] sm:$0xf] %v84
  %s88 = scalar_lea.vmem %s0, 76
  %v89 = vld [vmem:[%s88] sm:$0xf]
  %90 = xla_tuple %v89
  %91 = xla_tuple %90
  %v92 = vxor.u32 %v89, 2147483648
  %93 = xla_tuple %v92
  %s94 = scalar_lea.vmem %s1, 76
  %95 = vst [vmem:[%s94] sm:$0xf] %v92
  %s96 = scalar_lea.vmem %s0, 24
  %v97 = vld [vmem:[%s96] sm:$0xf]
  %98 = xla_tuple %v97
  %99 = xla_tuple %98
  %v100 = vxor.u32 %v97, 2147483648
  %101 = xla_tuple %v100
  %s102 = scalar_lea.vmem %s1, 24
  %103 = vst [vmem:[%s102] sm:$0xf] %v100
  %s104 = scalar_lea.vmem %s0, 80
  %v105 = vld [vmem:[%s104] sm:$0xf]
  %106 = xla_tuple %v105
  %107 = xla_tuple %106
  %v108 = vxor.u32 %v105, 2147483648
  %109 = xla_tuple %v108
  %s110 = scalar_lea.vmem %s1, 80
  %111 = vst [vmem:[%s110] sm:$0xf] %v108
  %s112 = scalar_lea.vmem %s0, 28
  %v113 = vld [vmem:[%s112] sm:$0xf]
  %114 = xla_tuple %v113
  %115 = xla_tuple %114
  %v116 = vxor.u32 %v113, 2147483648
  %117 = xla_tuple %v116
  %s118 = scalar_lea.vmem %s1, 28
  %119 = vst [vmem:[%s118] sm:$0xf] %v116
  %s120 = scalar_lea.vmem %s0, 84
  %v121 = vld [vmem:[%s120] sm:$0xf]
  %122 = xla_tuple %v121
  %123 = xla_tuple %122
  %v124 = vxor.u32 %v121, 2147483648
  %125 = xla_tuple %v124
  %s126 = scalar_lea.vmem %s1, 84
  %127 = vst [vmem:[%s126] sm:$0xf] %v124
  %s128 = scalar_lea.vmem %s0, 32
  %v129 = vld [vmem:[%s128] sm:$0xf]
  %130 = xla_tuple %v129
  %131 = xla_tuple %130
  %v132 = vxor.u32 %v129, 2147483648
  %133 = xla_tuple %v132
  %s134 = scalar_lea.vmem %s1, 32
  %135 = vst [vmem:[%s134] sm:$0xf] %v132
  %s136 = scalar_lea.vmem %s0, 88
  %v137 = vld [vmem:[%s136] sm:$0xf]
  %138 = xla_tuple %v137
  %139 = xla_tuple %138
  %v140 = vxor.u32 %v137, 2147483648
  %141 = xla_tuple %v140
  %s142 = scalar_lea.vmem %s1, 88
  %143 = vst [vmem:[%s142] sm:$0xf] %v140
  %s144 = scalar_lea.vmem %s0, 36
  %v145 = vld [vmem:[%s144] sm:$0xf]
  %146 = xla_tuple %v145
  %147 = xla_tuple %146
  %v148 = vxor.u32 %v145, 2147483648
  %149 = xla_tuple %v148
  %s150 = scalar_lea.vmem %s1, 36
  %151 = vst [vmem:[%s150] sm:$0xf] %v148
  %s152 = scalar_lea.vmem %s0, 92
  %v153 = vld [vmem:[%s152] sm:$0xf]
  %154 = xla_tuple %v153
  %155 = xla_tuple %154
  %v156 = vxor.u32 %v153, 2147483648
  %157 = xla_tuple %v156
  %s158 = scalar_lea.vmem %s1, 92
  %159 = vst [vmem:[%s158] sm:$0xf] %v156
  %s160 = scalar_lea.vmem %s0, 40
  %v161 = vld [vmem:[%s160] sm:$0xf]
  %162 = xla_tuple %v161
  %163 = xla_tuple %162
  %v164 = vxor.u32 %v161, 2147483648
  %165 = xla_tuple %v164
  %s166 = scalar_lea.vmem %s1, 40
  %167 = vst [vmem:[%s166] sm:$0xf] %v164
  %s168 = scalar_lea.vmem %s0, 96
  %v169 = vld [vmem:[%s168] sm:$0xf]
  %170 = xla_tuple %v169
  %171 = xla_tuple %170
  %v172 = vxor.u32 %v169, 2147483648
  %173 = xla_tuple %v172
  %s174 = scalar_lea.vmem %s1, 96
  %175 = vst [vmem:[%s174] sm:$0xf] %v172
  %s176 = scalar_lea.vmem %s0, 44
  %v177 = vld [vmem:[%s176] sm:$0xf]
  %178 = xla_tuple %v177
  %179 = xla_tuple %178
  %v180 = vxor.u32 %v177, 2147483648
  %181 = xla_tuple %v180
  %s182 = scalar_lea.vmem %s1, 44
  %183 = vst [vmem:[%s182] sm:$0xf] %v180
  %s184 = scalar_lea.vmem %s0, 100
  %v185 = vld [vmem:[%s184] sm:$0xf]
  %186 = xla_tuple %v185
  %187 = xla_tuple %186
  %v188 = vxor.u32 %v185, 2147483648
  %189 = xla_tuple %v188
  %s190 = scalar_lea.vmem %s1, 100
  %191 = vst [vmem:[%s190] sm:$0xf] %v188
  %s192 = scalar_lea.vmem %s0, 48
  %v193 = vld [vmem:[%s192] sm:$0xf]
  %194 = xla_tuple %v193
  %195 = xla_tuple %194
  %v196 = vxor.u32 %v193, 2147483648
  %197 = xla_tuple %v196
  %s198 = scalar_lea.vmem %s1, 48
  %199 = vst [vmem:[%s198] sm:$0xf] %v196
  %s200 = scalar_lea.vmem %s0, 104
  %v201 = vld [vmem:[%s200] sm:$0xf]
  %202 = xla_tuple %v201
  %203 = xla_tuple %202
  %v204 = vxor.u32 %v201, 2147483648
  %205 = xla_tuple %v204
  %s206 = scalar_lea.vmem %s1, 104
  %207 = vst [vmem:[%s206] sm:$0xf] %v204
  %s208 = scalar_lea.vmem %s0, 52
  %v209 = vld [vmem:[%s208] sm:$0xf]
  %210 = xla_tuple %v209
  %211 = xla_tuple %210
  %v212 = vxor.u32 %v209, 2147483648
  %213 = xla_tuple %v212
  %s214 = scalar_lea.vmem %s1, 52
  %215 = vst [vmem:[%s214] sm:$0xf] %v212
  %s216 = scalar_lea.vmem %s0, 108
  %v217 = vld [vmem:[%s216] sm:$0xf]
  %218 = xla_tuple %v217
  %219 = xla_tuple %218
  %v220 = vxor.u32 %v217, 2147483648
  %221 = xla_tuple %v220
  %s222 = scalar_lea.vmem %s1, 108
  %223 = vst [vmem:[%s222] sm:$0xf] %v220

// kernel: expand_loss.1
$region0: #{expand_loss.1}
  #allocation0 [shape = 'u32[]', space=smem, size = 0x4, offset = 0x4, fixed_abs, tag = 'smem constant byte address 0x4 - core index']
  #allocation1 [shape = 'u32[144,128]{1,0:T(1,128)}', space=vmem, size = 0x12000, scoped, tag = 'internal scratch']
  %s0 = inlined_call_operand.vmem [shape: f32[2,4,1681], index: 0, kind: input, shape index: {}]
  %s1 = inlined_call_operand.vmem [shape: f32[2,1681], index: 1, kind: input, shape index: {}]
  %s2 = inlined_call_operand.vmem [shape: f32[2,4,1], index: 2, kind: input, shape index: {}]
  %s3 = inlined_call_operand.vmem [shape: f32[2,1,1], index: 3, kind: output, shape index: {}]
  %s4 = sld [smem:[#allocation0]]
  $region45: #{expand_loss.1} parent=0
    _
  %s6 = ssub.s32 1, %s4
  %s7 = scalar_select 0, %s6, %s4
  loop: start=0, step=1, limit=4
  $region2: #{expand_loss.1} parent=0 // loop_pre_header
    _
  $region3: #{expand_loss.1} parent=0 // loop_header
    %s9 = sphi 0, %s13
    %p10 = scmp.ge.s32.totalorder %s9, 4
    %s19 = sphi 0, %s21
    %s22 = sphi 0, %s19
    %s23 = sphi 0, %s22
    %s39 = sphi 0, %s23
    %s43 = sphi 0, %s43
    %s45 = sphi 0, %s43
    %s46 = sphi 0, %s45
    %s60 = sphi 0, %s46
    %s66 = sphi 0, %s68
    %s69 = sphi 0, %s66
    %s70 = sphi 0, %s69
    %s86 = sphi 0, %s70
    %s92 = sphi 0, %s94
    %s95 = sphi 0, %s92
    %s96 = sphi 0, %s95
    %s112 = sphi 0, %s96
  $region4: #{expand_loss.1} parent=0 // loop_header_branch
    %12 = sbr.rel (%p10) target = $region8
  $region5: #{expand_loss.1} parent=0 // loop_body
    %s14 = ssub.s32 %s9, 1
    %s15 = ssub.s32 %s9, 2
    %s16 = sadd.s32 %s9, 1
    %s17 = ssub.s32 %s9, %s16
    %p18 = scmp.eq.s32.totalorder %s17, 0
    %s20 = sadd.s32 %s19, 1
    %s21 = scalar_select %p18, %s19, %s20
    %p24 = pneg %p18
    %p25 = scmp.eq.s32.totalorder %s9, 1
    %p26 = por %p24, %p25
    %p27 = scmp.ne.s32.totalorder %s19, %s22
    %p28 = scmp.eq.s32.totalorder %s9, 0
    %p29 = por %p27, %p28
    %p30 = scmp.ne.s32.totalorder %s19, %s22
    %p31 = scmp.eq.s32.totalorder %s14, 1
    %p32 = por %p30, %p31
    %p33 = scmp.ne.s32.totalorder %s22, %s23
    %p34 = scmp.eq.s32.totalorder %s14, 0
    %p35 = por %p33, %p34
    %p36 = scmp.ne.s32.totalorder %s22, %s23
    %p37 = scmp.eq.s32.totalorder %s15, 1
    %p38 = por %p36, %p37
    %p40 = scmp.ne.s32.totalorder %s23, %s39
    %p41 = scmp.eq.s32.totalorder %s15, 0
    %p42 = por %p40, %p41
    %s44 = sadd.s32 %s43, 1
    %p47 = scmp.eq.s32.totalorder %s9, 1
    %p48 = scmp.ne.s32.totalorder %s43, %s45
    %p49 = scmp.eq.s32.totalorder %s9, 0
    %p50 = por %p48, %p49
    %p51 = scmp.ne.s32.totalorder %s43, %s45
    %p52 = scmp.eq.s32.totalorder %s14, 1
    %p53 = por %p51, %p52
    %p54 = scmp.ne.s32.totalorder %s45, %s46
    %p55 = scmp.eq.s32.totalorder %s14, 0
    %p56 = por %p54, %p55
    %p57 = scmp.ne.s32.totalorder %s45, %s46
    %p58 = scmp.eq.s32.totalorder %s15, 1
    %p59 = por %p57, %p58
    %p61 = scmp.ne.s32.totalorder %s46, %s60
    %p62 = scmp.eq.s32.totalorder %s15, 0
    %p63 = por %p61, %p62
    %s64 = ssub.s32 %s9, %s16
    %p65 = scmp.eq.s32.totalorder %s64, 0
    %s67 = sadd.s32 %s66, 1
    %s68 = scalar_select %p65, %s66, %s67
    %p71 = pneg %p65
    %p72 = scmp.eq.s32.totalorder %s9, 1
    %p73 = por %p71, %p72
    %p74 = scmp.ne.s32.totalorder %s66, %s69
    %p75 = scmp.eq.s32.totalorder %s9, 0
    %p76 = por %p74, %p75
    %p77 = scmp.ne.s32.totalorder %s66, %s69
    %p78 = scmp.eq.s32.totalorder %s14, 1
    %p79 = por %p77, %p78
    %p80 = scmp.ne.s32.totalorder %s69, %s70
    %p81 = scmp.eq.s32.totalorder %s14, 0
    %p82 = por %p80, %p81
    %p83 = scmp.ne.s32.totalorder %s69, %s70
    %p84 = scmp.eq.s32.totalorder %s15, 1
    %p85 = por %p83, %p84
    %p87 = scmp.ne.s32.totalorder %s70, %s86
    %p88 = scmp.eq.s32.totalorder %s15, 0
    %p89 = por %p87, %p88
    %s90 = ssub.s32 %s9, %s16
    %p91 = scmp.eq.s32.totalorder %s90, 0
    %s93 = sadd.s32 %s92, 1
    %s94 = scalar_select %p91, %s92, %s93
    %p97 = pneg %p91
    %p98 = scmp.eq.s32.totalorder %s9, 1
    %p99 = por %p97, %p98
    %p100 = scmp.ne.s32.totalorder %s92, %s95
    %p101 = scmp.eq.s32.totalorder %s9, 0
    %p102 = por %p100, %p101
    %p103 = scmp.ne.s32.totalorder %s92, %s95
    %p104 = scmp.eq.s32.totalorder %s14, 1
    %p105 = por %p103, %p104
    %p106 = scmp.ne.s32.totalorder %s95, %s96
    %p107 = scmp.eq.s32.totalorder %s14, 0
    %p108 = por %p106, %p107
    %p109 = scmp.ne.s32.totalorder %s95, %s96
    %p110 = scmp.eq.s32.totalorder %s15, 1
    %p111 = por %p109, %p110
    %p113 = scmp.ne.s32.totalorder %s96, %s112
    %p114 = scmp.eq.s32.totalorder %s15, 0
    %p115 = por %p113, %p114
    %p116 = scmp.le.s32.totalorder 1, %s9
    %p117 = scmp.lt.s32.totalorder %s9, 3
    %p118 = pnand %p116, %p117
    %p119 = pneg %p118
    // Predicated region
    $region9: #{expand_loss.1} parent=5 // pred_check
      _
    $region10: #{expand_loss.1} parent=5 // pred_check_branch
      %121 = sbr.rel (%p118) target = $region12
    $region11: #{expand_loss.1} parent=5 // pred_region
      %s122 = ssub.s32 %s9, 1
      // Predicated region
      $region13: #{expand_loss.1} parent=11 // pred_check
        %p123 = pneg %p56
      $region14: #{expand_loss.1} parent=11 // pred_check_branch
        %125 = sbr.rel (%p123) target = $region16
      $region15: #{expand_loss.1} parent=11 // pred_region
        _
      $region16: #{expand_loss.1} parent=11 // pred_fallthru
        _
    $region12: #{expand_loss.1} parent=5 // pred_fallthru
      _
    %p126 = scmp.lt.s32.totalorder %s9, 2
    // Predicated region
    $region17: #{expand_loss.1} parent=5 // pred_check
      %p127 = pneg %p126
    $region18: #{expand_loss.1} parent=5 // pred_check_branch
      %129 = sbr.rel (%p127) target = $region20
    $region19: #{expand_loss.1} parent=5 // pred_region
      // Predicated region
      $region21: #{expand_loss.1} parent=19 // pred_check
        %p130 = pneg %p29
      $region22: #{expand_loss.1} parent=19 // pred_check_branch
        %132 = sbr.rel (%p130) target = $region24
      $region23: #{expand_loss.1} parent=19 // pred_region
        %p133 = scmp.lt.s32.totalorder %s9, 1
        %s134 = scalar_select %p133, %s9, 1
        %s135 = smul.addr %s134, 14
        %s136 = smul.addr %s135, 4
        %s137 = scalar_lea.vmem %s0, %s136
      $region24: #{expand_loss.1} parent=19 // pred_fallthru
        _
      // Predicated region
      $region25: #{expand_loss.1} parent=19 // pred_check
        %p138 = pneg %p76
      $region26: #{expand_loss.1} parent=19 // pred_check_branch
        %140 = sbr.rel (%p138) target = $region28
      $region27: #{expand_loss.1} parent=19 // pred_region
        %p141 = scmp.lt.s32.totalorder %s9, 1
        %s142 = scalar_select %p141, %s9, 1
        %s143 = smul.addr %s142, 4
        %s144 = scalar_lea.vmem %s2, %s143
      $region28: #{expand_loss.1} parent=19 // pred_fallthru
        _
    $region20: #{expand_loss.1} parent=5 // pred_fallthru
      _
    %p145 = scmp.le.s32.totalorder 1, %s9
    %p146 = scmp.lt.s32.totalorder %s9, 3
    %p147 = pnand %p145, %p146
    %p148 = pneg %p147
    // Predicated region
    $region29: #{expand_loss.1} parent=5 // pred_check
      _
    $region30: #{expand_loss.1} parent=5 // pred_check_branch
      %150 = sbr.rel (%p147) target = $region32
    $region31: #{expand_loss.1} parent=5 // pred_region
      %s151 = ssub.s32 %s9, 1
      %p152 = scmp.lt.s32.totalorder %s14, 1
      %s153 = scalar_select %p152, %s14, 1
      %s154 = smul.addr %s153, 14
      %s155 = smul.addr %s154, 4
      %s156 = scalar_lea.vmem %s0, %s155
      %p157 = pneg %p35
      %p158 = pneg %p32
      %p159 = pneg %p56
      %p160 = pneg %p53
      %p161 = scmp.lt.s32.totalorder %s14, 1
      %s162 = scalar_select %p161, %s14, 1
      %s163 = smul.addr %s162, 4
      %s164 = scalar_lea.vmem %s2, %s163
      %p165 = pneg %p82
      %p166 = pneg %p79
      %p167 = pneg %p108
      %p168 = pneg %p105
      %p169 = scmp.lt.s32.totalorder %s14, 1
      %s170 = scalar_select %p169, %s14, 1
      %s171 = scalar_lea.vmem %s3, %s170
      %p172 = scmp.lt.s32.totalorder %s14, 1
      %s173 = scalar_select %p172, %s14, 1
      %s174 = smul.addr %s173, 14
      %s175 = smul.addr %s174, 4
      %s176 = scalar_lea.vmem %s0, %s175
      %p177 = scmp.lt.s32.totalorder %s14, 1
      %s178 = scalar_select %p177, %s14, 1
      %s179 = smul.addr %s178, 4
      %s180 = scalar_lea.vmem %s2, %s179
      %p181 = scmp.lt.s32.totalorder %s14, 1
      %s182 = scalar_select %p181, %s14, 1
      %s183 = scalar_lea.vmem %s3, %s182
      %v184 = vld [vmem:[%s176] sm:$0xff]
      %v185 = vld [vmem:[%s176 + $0x8] sm:$0xff]
      %v186 = vld [vmem:[%s176 + $0x10] sm:$0xff]
      %v187 = vld [vmem:[%s176 + $0x18] sm:$0xff]
      %v188 = vld [vmem:[%s176 + $0x20] sm:$0xff]
      %v189 = vld [vmem:[%s176 + $0x28] sm:$0xff]
      %v190 = vld [vmem:[%s176 + $0x30] sm:$0xff]
      %v191 = vld [vmem:[%s1] ss:$2 sm:$0xff]
      %s192 = scalar_lea.vmem %s1, 16
      %v193 = vld [vmem:[%s192] ss:$2 sm:$0x3f]
      %s194 = scalar_lea.vmem %s1, 1
      %v195 = vld [vmem:[%s194] ss:$2 sm:$0xff]
      %s196 = scalar_lea.vmem %s1, 17
      %v197 = vld [vmem:[%s196] ss:$2 sm:$0x3f]
      %v200 = vlaneseq
      %v201 = vshrl.u32 %v200, 7
      %v202 = vsub.s32 0, %v201
      %v203 = vrot.slane %v191, %v202
      %v204 = vlaneseq
      %v205 = vshrl.u32 %v204, 7
      %v206 = vsub.s32 1, %v205
      %v207 = vrot.slane %v191, %v206
      %v208 = vlaneseq
      %v209 = vshrl.u32 %v208, 7
      %v210 = vsub.s32 2, %v209
      %v211 = vrot.slane %v191, %v210
      %v212 = vlaneseq
      %v213 = vshrl.u32 %v212, 7
      %v214 = vsub.s32 3, %v213
      %v215 = vrot.slane %v191, %v214
      %v216 = vlaneseq
      %v217 = vshrl.u32 %v216, 7
      %v218 = vsub.s32 4, %v217
      %v219 = vrot.slane %v191, %v218
      %v220 = vlaneseq
      %v221 = vshrl.u32 %v220, 7
      %v222 = vsub.s32 5, %v221
      %v223 = vrot.slane %v191, %v222
      %v224 = vlaneseq
      %v225 = vshrl.u32 %v224, 7
      %v226 = vsub.s32 6, %v225
      %v227 = vrot.slane %v191, %v226
      %v228 = vlaneseq
      %v229 = vshrl.u32 %v228, 7
      %v230 = vsub.s32 7, %v229
      %v231 = vrot.slane %v191, %v230
      %v232 = vlaneseq
      %v233 = vshrl.u32 %v232, 7
      %v234 = vsub.s32 0, %v233
      %v235 = vrot.slane %v193, %v234
      %v236 = vlaneseq
      %v237 = vshrl.u32 %v236, 7
      %v238 = vsub.s32 1, %v237
      %v239 = vrot.slane %v193, %v238
      %v240 = vlaneseq
      %v241 = vshrl.u32 %v240, 7
      %v242 = vsub.s32 2, %v241
      %v243 = vrot.slane %v193, %v242
      %v244 = vlaneseq
      %v245 = vshrl.u32 %v244, 7
      %v246 = vsub.s32 3, %v245
      %v247 = vrot.slane %v193, %v246
      %v248 = vlaneseq
      %v249 = vshrl.u32 %v248, 7
      %v250 = vsub.s32 4, %v249
      %v251 = vrot.slane %v193, %v250
      %v252 = vlaneseq
      %v253 = vshrl.u32 %v252, 7
      %v254 = vsub.s32 5, %v253
      %v255 = vrot.slane %v193, %v254
      %v256 = vcombine.low %v203, %v207
      %v257 = vcombine.low %v211, %v215
      %v258 = vcombine.low %v219, %v223
      %v259 = vcombine.low %v227, %v231
      %v260 = vcombine.low %v235, %v239
      %v261 = vcombine.low %v243, %v247
      %v262 = vcombine.low %v251, %v255
      %v270 = vmul.f32 %v184, %v256
      %v271 = vmul.f32 %v185, %v257
      %v272 = vmul.f32 %v186, %v258
      %v273 = vmul.f32 %v187, %v259
      %v274 = vmul.f32 %v188, %v260
      %v275 = vmul.f32 %v189, %v261
      %v276 = vmul.f32 %v190, %v262
      %v284 = vcombine.high %v270, %v270
      %v285 = vcombine.high %v271, %v271
      %v286 = vcombine.high %v272, %v272
      %v287 = vcombine.high %v273, %v273
      %v288 = vcombine.high %v274, %v274
      %v289 = vcombine.high %v275, %v275
      %v290 = vcombine.high %v276, %v276
      %vm298 = vcmask 1043456
      %v299 = vsel %vm298, %v270, 0.0
      %v300 = vsel %vm298, %v284, 0.0
      %v301 = vadd.f32 %v299, %v300
      %v302 = vsel %vm298, %v271, 0.0
      %v303 = vadd.f32 %v301, %v302
      %v304 = vsel %vm298, %v285, 0.0
      %v305 = vadd.f32 %v303, %v304
      %v306 = vsel %vm298, %v272, 0.0
      %v307 = vadd.f32 %v305, %v306
      %v308 = vsel %vm298, %v286, 0.0
      %v309 = vadd.f32 %v307, %v308
      %v310 = vsel %vm298, %v273, 0.0
      %v311 = vadd.f32 %v309, %v310
      %v312 = vsel %vm298, %v287, 0.0
      %v313 = vadd.f32 %v311, %v312
      %v314 = vsel %vm298, %v274, 0.0
      %v315 = vadd.f32 %v313, %v314
      %v316 = vsel %vm298, %v288, 0.0
      %v317 = vadd.f32 %v315, %v316
      %v318 = vsel %vm298, %v275, 0.0
      %v319 = vadd.f32 %v317, %v318
      %v320 = vsel %vm298, %v289, 0.0
      %v321 = vadd.f32 %v319, %v320
      %v322 = vsel %vm298, %v276, 0.0
      %v323 = vadd.f32 %v321, %v322
      %vm324 = vcmask 134144
      %v325 = vsel %vm324, %v290, 0.0
      %v326 = vadd.f32 %v323, %v325
      %327 = vadd.xlane.f32.xlu0 %v326
      %v328 = vpop.xlane.xlu0 %327
      %v331 = vlaneseq
      %v332 = vshrl.u32 %v331, 7
      %v333 = vsub.s32 0, %v332
      %v334 = vrot.slane %v195, %v333
      %v335 = vlaneseq
      %v336 = vshrl.u32 %v335, 7
      %v337 = vsub.s32 1, %v336
      %v338 = vrot.slane %v195, %v337
      %v339 = vlaneseq
      %v340 = vshrl.u32 %v339, 7
      %v341 = vsub.s32 2, %v340
      %v342 = vrot.slane %v195, %v341
      %v343 = vlaneseq
      %v344 = vshrl.u32 %v343, 7
      %v345 = vsub.s32 3, %v344
      %v346 = vrot.slane %v195, %v345
      %v347 = vlaneseq
      %v348 = vshrl.u32 %v347, 7
      %v349 = vsub.s32 4, %v348
      %v350 = vrot.slane %v195, %v349
      %v351 = vlaneseq
      %v352 = vshrl.u32 %v351, 7
      %v353 = vsub.s32 5, %v352
      %v354 = vrot.slane %v195, %v353
      %v355 = vlaneseq
      %v356 = vshrl.u32 %v355, 7
      %v357 = vsub.s32 6, %v356
      %v358 = vrot.slane %v195, %v357
      %v359 = vlaneseq
      %v360 = vshrl.u32 %v359, 7
      %v361 = vsub.s32 7, %v360
      %v362 = vrot.slane %v195, %v361
      %v363 = vlaneseq
      %v364 = vshrl.u32 %v363, 7
      %v365 = vsub.s32 0, %v364
      %v366 = vrot.slane %v197, %v365
      %v367 = vlaneseq
      %v368 = vshrl.u32 %v367, 7
      %v369 = vsub.s32 1, %v368
      %v370 = vrot.slane %v197, %v369
      %v371 = vlaneseq
      %v372 = vshrl.u32 %v371, 7
      %v373 = vsub.s32 2, %v372
      %v374 = vrot.slane %v197, %v373
      %v375 = vlaneseq
      %v376 = vshrl.u32 %v375, 7
      %v377 = vsub.s32 3, %v376
      %v378 = vrot.slane %v197, %v377
      %v379 = vlaneseq
      %v380 = vshrl.u32 %v379, 7
      %v381 = vsub.s32 4, %v380
      %v382 = vrot.slane %v197, %v381
      %v383 = vlaneseq
      %v384 = vshrl.u32 %v383, 7
      %v385 = vsub.s32 5, %v384
      %v386 = vrot.slane %v197, %v385
      %v387 = vcombine.low %v334, %v338
      %v388 = vcombine.low %v342, %v346
      %v389 = vcombine.low %v350, %v354
      %v390 = vcombine.low %v358, %v362
      %v391 = vcombine.low %v366, %v370
      %v392 = vcombine.low %v374, %v378
      %v393 = vcombine.low %v382, %v386
      %v401 = vmul.f32 %v184, %v387
      %v402 = vmul.f32 %v185, %v388
      %v403 = vmul.f32 %v186, %v389
      %v404 = vmul.f32 %v187, %v390
      %v405 = vmul.f32 %v188, %v391
      %v406 = vmul.f32 %v189, %v392
      %v407 = vmul.f32 %v190, %v393
      %v415 = vcombine.high %v401, %v401
      %v416 = vcombine.high %v402, %v402
      %v417 = vcombine.high %v403, %v403
      %v418 = vcombine.high %v404, %v404
      %v419 = vcombine.high %v405, %v405
      %v420 = vcombine.high %v406, %v406
      %v421 = vcombine.high %v407, %v407
      %v429 = vsel %vm298, %v401, 0.0
      %v430 = vsel %vm298, %v415, 0.0
      %v431 = vadd.f32 %v429, %v430
      %v432 = vsel %vm298, %v402, 0.0
      %v433 = vadd.f32 %v431, %v432
      %v434 = vsel %vm298, %v416, 0.0
      %v435 = vadd.f32 %v433, %v434
      %v436 = vsel %vm298, %v403, 0.0
      %v437 = vadd.f32 %v435, %v436
      %v438 = vsel %vm298, %v417, 0.0
      %v439 = vadd.f32 %v437, %v438
      %v440 = vsel %vm298, %v404, 0.0
      %v441 = vadd.f32 %v439, %v440
      %v442 = vsel %vm298, %v418, 0.0
      %v443 = vadd.f32 %v441, %v442
      %v444 = vsel %vm298, %v405, 0.0
      %v445 = vadd.f32 %v443, %v444
      %v446 = vsel %vm298, %v419, 0.0
      %v447 = vadd.f32 %v445, %v446
      %v448 = vsel %vm298, %v406, 0.0
      %v449 = vadd.f32 %v447, %v448
      %v450 = vsel %vm298, %v420, 0.0
      %v451 = vadd.f32 %v449, %v450
      %v452 = vsel %vm298, %v407, 0.0
      %v453 = vadd.f32 %v451, %v452
      %v454 = vsel %vm324, %v421, 0.0
      %v455 = vadd.f32 %v453, %v454
      %456 = vadd.xlane.f32.xlu0 %v455
      %v457 = vpop.xlane.xlu0 %456
      %v465 = vcombine.high %v184, %v184
      %v466 = vcombine.high %v185, %v185
      %v467 = vcombine.high %v186, %v186
      %v468 = vcombine.high %v187, %v187
      %v469 = vcombine.high %v188, %v188
      %v470 = vcombine.high %v189, %v189
      %v471 = vcombine.high %v190, %v190
      %v479 = vsel %vm298, %v184, -inf
      %v480 = vsel %vm298, %v465, -inf
      %v481 = vsel %vm298, %v185, -inf
      %v482 = vsel %vm298, %v466, -inf
      %v483 = vsel %vm298, %v186, -inf
      %v484 = vmax.f32 %v479, %v483
      %v485 = vsel %vm298, %v467, -inf
      %v486 = vmax.f32 %v480, %v485
      %v487 = vsel %vm298, %v187, -inf
      %v488 = vmax.f32 %v481, %v487
      %v489 = vsel %vm298, %v468, -inf
      %v490 = vmax.f32 %v482, %v489
      %v491 = vsel %vm298, %v188, -inf
      %v492 = vmax.f32 %v484, %v491
      %v493 = vsel %vm298, %v469, -inf
      %v494 = vmax.f32 %v486, %v493
      %v495 = vsel %vm298, %v189, -inf
      %v496 = vmax.f32 %v488, %v495
      %v497 = vsel %vm298, %v470, -inf
      %v498 = vmax.f32 %v490, %v497
      %v499 = vsel %vm298, %v190, -inf
      %v500 = vmax.f32 %v492, %v499
      %v501 = vsel %vm324, %v471, -inf
      %v502 = vmax.f32 %v494, %v501
      %v503 = vmax.f32 %v500, %v502
      %v504 = vmax.f32 %v496, %v498
      %v505 = vmax.f32 %v503, %v504
      %506 = vmax.xlane.f32.xlu0 %v505
      %v507 = vpop.xlane.xlu0 %506
      %v508 = vld [vmem:[%s180] sm:$0xf]
      %vm509 = vcmp.gt.f32.partialorder %v508, 0.5
      %v510 = vlaneseq
      %v511 = vshrl.u32 %v510, 7
      %vm512 = vcmp.eq.s32.totalorder %v511, 0
      %vm513 = vmand %vm509, %vm512
      %vm514 = vmxor %vm512, 1
      %vm515 = vmand %vm509, %vm514
      %vm516 = vmxor %vm509, 1
      %v517 = vsel %vm515, 1, 0
      %v518 = vcvt.s32.f32 %v517
      %vm519 = vcmask 3072
      %v520 = vsel %vm519, %v518, 0.0
      %v521 = vrot.slane %v520, 4
      %v522 = vadd.f32 %v520, %v521
      %v523 = vrot.slane %v522, 2
      %v524 = vadd.f32 %v522, %v523
      %v525 = vrot.slane %v524, 1
      %v526 = vadd.f32 %v524, %v525
      %v527 = vsel %vm516, 1, 0
      %v528 = vcvt.s32.f32 %v527
      %v529 = vsel %vm519, %v528, 0.0
      %v530 = vrot.slane %v529, 4
      %v531 = vadd.f32 %v529, %v530
      %v532 = vrot.slane %v531, 2
      %v533 = vadd.f32 %v531, %v532
      %v534 = vrot.slane %v533, 1
      %v535 = vadd.f32 %v533, %v534
      %v536 = vlog2.pop %v328
      %v537 = vmul.f32 %v536, 0.6931472
      %v538 = vsub.f32 0.0, %v537
      %v539 = vsel %vm513, %v538, 0.0
      %v540 = vsel %vm519, %v539, 0.0
      %v541 = vrot.slane %v540, 4
      %v542 = vadd.f32 %v540, %v541
      %v543 = vrot.slane %v542, 2
      %v544 = vadd.f32 %v542, %v543
      %v545 = vrot.slane %v544, 1
      %v546 = vadd.f32 %v544, %v545
      %v547 = vlog2.pop %v457
      %v548 = vmul.f32 %v547, 0.6931472
      %v549 = vsub.f32 0.0, %v548
      %v550 = vsel %vm515, %v549, 0.0
      %v551 = vsel %vm519, %v550, 0.0
      %v552 = vrot.slane %v551, 4
      %v553 = vadd.f32 %v551, %v552
      %v554 = vrot.slane %v553, 2
      %v555 = vadd.f32 %v553, %v554
      %v556 = vrot.slane %v555, 1
      %v557 = vadd.f32 %v555, %v556
      %v558 = vlog2.pop %v507
      %v559 = vmul.f32 %v558, 0.6931472
      %v560 = vsub.f32 0.0, %v559
      %v561 = vsel %vm516, %v560, 0.0
      %v562 = vsel %vm519, %v561, 0.0
      %v563 = vrot.slane %v562, 4
      %v564 = vadd.f32 %v562, %v563
      %v565 = vrot.slane %v564, 2
      %v566 = vadd.f32 %v564, %v565
      %v567 = vrot.slane %v566, 1
      %v568 = vadd.f32 %v566, %v567
      %v569 = vrcp.pop %v526
      %v570 = vmul.f32 %v557, %v569
      %v571 = vadd.f32 %v546, %v570
      %v572 = vrcp.pop %v535
      %v573 = vmul.f32 %v568, %v572
      %v574 = vadd.f32 %v571, %v573
      %vm575 = vcmask 0
      %576 = vst.msk [vmem:[%s183] sm:$0x1] %vm575, %v574
      %p577 = scmp.lt.s32.totalorder %s14, 1
      %s578 = scalar_select %p577, %s14, 1
      %s579 = scalar_lea.vmem %s3, %s578
      // Predicated region
      $region33: #{expand_loss.1} parent=31 // pred_check
        %p580 = pneg %p105
      $region34: #{expand_loss.1} parent=31 // pred_check_branch
        %582 = sbr.rel (%p580) target = $region36
      $region35: #{expand_loss.1} parent=31 // pred_region
        _
      $region36: #{expand_loss.1} parent=31 // pred_fallthru
        _
    $region32: #{expand_loss.1} parent=5 // pred_fallthru
      _
    %p583 = scmp.le.s32.totalorder 2, %s9
    // Predicated region
    $region37: #{expand_loss.1} parent=5 // pred_check
      %p584 = pneg %p583
    $region38: #{expand_loss.1} parent=5 // pred_check_branch
      %586 = sbr.rel (%p584) target = $region40
    $region39: #{expand_loss.1} parent=5 // pred_region
      %s587 = ssub.s32 %s9, 2
      // Predicated region
      $region41: #{expand_loss.1} parent=39 // pred_check
        %p588 = pneg %p111
      $region42: #{expand_loss.1} parent=39 // pred_check_branch
        %590 = sbr.rel (%p588) target = $region44
      $region43: #{expand_loss.1} parent=39 // pred_region
        %p591 = scmp.lt.s32.totalorder %s15, 1
        %s592 = scalar_select %p591, %s15, 1
        %s593 = scalar_lea.vmem %s3, %s592
      $region44: #{expand_loss.1} parent=39 // pred_fallthru
        _
    $region40: #{expand_loss.1} parent=5 // pred_fallthru
      _
  $region6: #{expand_loss.1} parent=0 // loop_footer
    %s13 = sadd.s32 1, %s9
  $region7: #{expand_loss.1} parent=0 // loop_footer_branch
    %8 = sbr.rel target = $region3
  $region8: #{expand_loss.1} parent=0 // loop_exit
    _

</llo_original>
